<compile_context>
chip_gen: v5e
topology: v5e:2x2
jax: 0.10.0
libtpu: 0.0.40
codegen_flags: <defaults>
</compile_context>

<pallas_src>
import jax
import jax.numpy as jnp
from jax import lax
from jax.experimental import pallas as pl
from jax.experimental.pallas import tpu as pltpu

LEAKY_SLOPE = 0.01  # nn.LeakyReLU default
EMB_DIM = 64


def _round_up(x, m):
    return ((x + m - 1) // m) * m


def _leaky_relu(x):
    # max(x, a*x) == LeakyReLU(x) exactly for 0 < a < 1 (2 VPU ops, not 3).
    return jnp.maximum(x, LEAKY_SLOPE * x)


def _price_kernel(xu_ref, xl_ref, wu_ref, bu_ref, wl_ref, bl_ref, bias_ref,
                  out_ref):
    # xu_ref:  [TB, UD]   user-feature batch tile, natural layout (pipelined)
    # xl_ref:  [TB, LD]   loc-feature  batch tile, natural layout (pipelined)
    # wu_ref:  [E, UD]    Wu^T (VMEM-resident across grid steps)
    # wl_ref:  [E, LD]    Wl^T (VMEM-resident)
    # bu_ref:  [E, 1]     user Linear bias (broadcast over lanes)
    # bl_ref:  [E, 1]     loc  Linear bias
    # bias_ref:[1, 1]     final scalar bias, in SMEM
    # out_ref: [1, TB]    lane-dense output row (batch on the lane axis)
    dn = (((1,), (1,)), ((), ()))  # contract the feature axis of both operands
    u = lax.dot_general(wu_ref[...], xu_ref[...], dn,
                        preferred_element_type=jnp.float32)      # [E, TB]
    l = lax.dot_general(wl_ref[...], xl_ref[...], dn,
                        preferred_element_type=jnp.float32)      # [E, TB]
    u = _leaky_relu(u + bu_ref[...])
    l = _leaky_relu(l + bl_ref[...])
    prod = u * l                                                 # [E, TB]
    # Sublane-axis reduction -> lane-dense [1, TB].  (On v7x this reduce could
    # optionally be offloaded to the idle MXU via jnp.dot(ones((1, E)), prod).)
    out_ref[...] = jnp.sum(prod, axis=0, keepdims=True) + bias_ref[0, 0]


def mi_price_regression_v1_pallas(feat_user, feat_loc, params, *, tile_b=8192):
    """feat_user: [B, user_dim], feat_loc: [B, loc_dim], both float32.

    params: wu [user_dim, E], bu [1, E], wl [loc_dim, E], bl [1, E], bias [1].
    Returns [B, 1] float32.

    tile_b: batch rows per grid step (rounded to a multiple of 128 lanes).
    VMEM use is only a few MiB even at 8192-16384, so pick the largest tile the
    batch warrants: 4096-8192 everywhere, up to 16384 on v7x.
    """
    B, user_dim = feat_user.shape
    _, loc_dim = feat_loc.shape
    E = params["wu"].shape[1]

    feat_user = feat_user.astype(jnp.float32)
    feat_loc = feat_loc.astype(jnp.float32)

    # --- tiny wrapper-side parameter plumbing (weights only; no feature pass) --
    wu_t = params["wu"].T.astype(jnp.float32)                    # [E, user_dim]
    wl_t = params["wl"].T.astype(jnp.float32)                    # [E, loc_dim]
    bu_col = params["bu"].reshape(E, 1).astype(jnp.float32)      # [E, 1]
    bl_col = params["bl"].reshape(E, 1).astype(jnp.float32)      # [E, 1]
    bias2d = params["bias"].reshape(1, 1).astype(jnp.float32)    # [1, 1] (SMEM)

    # Batch tile (output lane axis): multiple of 128, clamped for tiny batches.
    tile_b = _round_up(max(tile_b, 128), 128)
    tb = min(tile_b, _round_up(B, 128))
    num_tiles = pl.cdiv(B, tb)
    # Only the OUTPUT allocation is rounded up (full, unmasked stores); the
    # inputs are not padded — the last feature tile may be partial.
    b_out = num_tiles * tb

    out = pl.pallas_call(
        _price_kernel,
        out_shape=jax.ShapeDtypeStruct((1, b_out), jnp.float32),
        grid=(num_tiles,),
        in_specs=[
            pl.BlockSpec((tb, user_dim), lambda i: (i, 0)),  # user feats (pipelined)
            pl.BlockSpec((tb, loc_dim), lambda i: (i, 0)),   # loc feats (pipelined)
            pl.BlockSpec((E, user_dim), lambda i: (0, 0)),   # Wu^T (resident)
            pl.BlockSpec((E, 1), lambda i: (0, 0)),          # bu
            pl.BlockSpec((E, loc_dim), lambda i: (0, 0)),    # Wl^T (resident)
            pl.BlockSpec((E, 1), lambda i: (0, 0)),          # bl
            pl.BlockSpec(memory_space=pltpu.MemorySpace.SMEM),  # scalar bias
        ],
        out_specs=pl.BlockSpec((1, tb), lambda i: (0, i)),   # lane-dense store
        compiler_params=pltpu.CompilerParams(
            dimension_semantics=("parallel",),               # megacore / v7x 2-TC split
            vmem_limit_bytes=32 * 1024 * 1024,
        ),
    )(feat_user, feat_loc, wu_t, bu_col, wl_t, bl_col, bias2d)

    return out[0, :B].reshape(B, 1)


def init_params(key, user_dim, loc_dim, emb_dim=EMB_DIM):
    """Deterministic synthetic parameters (Linear weights stored as [in, out])."""
    k1, k2, k3, k4, k5 = jax.random.split(key, 5)
    su = 1.0 / jnp.sqrt(jnp.float32(user_dim))
    sl = 1.0 / jnp.sqrt(jnp.float32(loc_dim))
    return {
        "wu": jax.random.uniform(k1, (user_dim, emb_dim), jnp.float32, -su, su),
        "bu": jax.random.uniform(k2, (1, emb_dim), jnp.float32, -su, su),
        "wl": jax.random.uniform(k3, (loc_dim, emb_dim), jnp.float32, -sl, sl),
        "bl": jax.random.uniform(k4, (1, emb_dim), jnp.float32, -sl, sl),
        "bias": jax.random.uniform(k5, (1,), jnp.float32, -0.1, 0.1),
    }


def reference_forward(feat_user, feat_loc, params):
    """Pure-JAX reference matching the PyTorch forward (independent formulation)."""
    def leaky(x):
        return jnp.where(x > 0, x, LEAKY_SLOPE * x)
    u = leaky(feat_user @ params["wu"] + params["bu"])
    l = leaky(feat_loc @ params["wl"] + params["bl"])
    return jnp.sum(u * l, axis=1, keepdims=True) + params["bias"]


if __name__ == "__main__":
    USER_DIM, LOC_DIM = 32, 16

    key = jax.random.PRNGKey(0)
    k_u, k_l, k_p, k_u2, k_l2 = jax.random.split(key, 5)
    params = init_params(k_p, USER_DIM, LOC_DIM)

    # Small canonical case (B=8): single (partial) tile.
    B = 8
    feat_user = jax.random.normal(k_u, (B, USER_DIM), jnp.float32)
    feat_loc = jax.random.normal(k_l, (B, LOC_DIM), jnp.float32)
    out = mi_price_regression_v1_pallas(feat_user, feat_loc, params)
    out = jax.block_until_ready(out)
    ref = reference_forward(feat_user, feat_loc, params)
    assert out.shape == (B, 1), out.shape
    assert jnp.allclose(out, ref, atol=1e-4, rtol=1e-4), (out, ref)

    # Non-divisible batch (B=200, tile 128): exercises the masked partial
    # last-tile path with no input padding.
    B2 = 200
    feat_user2 = jax.random.normal(k_u2, (B2, USER_DIM), jnp.float32)
    feat_loc2 = jax.random.normal(k_l2, (B2, LOC_DIM), jnp.float32)
    out2 = mi_price_regression_v1_pallas(feat_user2, feat_loc2, params, tile_b=128)
    out2 = jax.block_until_ready(out2)
    ref2 = reference_forward(feat_user2, feat_loc2, params)
    assert out2.shape == (B2, 1), out2.shape
    assert jnp.allclose(out2, ref2, atol=1e-4, rtol=1e-4), (out2, ref2)

    print("KERNEL_OK")
</pallas_src>

<mosaic_0001>
module attributes {stable_mosaic.version = 11 : i64} {
  func.func @_price_kernel(%arg0: i32, %arg1: memref<128x32xf32, #tpu.memory_space<vmem>>, %arg2: memref<128x16xf32, #tpu.memory_space<vmem>>, %arg3: memref<64x32xf32, #tpu.memory_space<vmem>>, %arg4: memref<64x1xf32, #tpu.memory_space<vmem>>, %arg5: memref<64x16xf32, #tpu.memory_space<vmem>>, %arg6: memref<64x1xf32, #tpu.memory_space<vmem>>, %arg7: memref<1x1xf32, #tpu.memory_space<smem>>, %arg8: memref<1x128xf32, #tpu.memory_space<vmem>>) attributes {dimension_semantics = [#tpu.dimension_semantics<parallel>], iteration_bounds = array<i64: 1>, scalar_prefetch = 0 : i64, scratch_operands = 0 : i64, tpu.core_type = #tpu.core_type<tc>, window_params = [{transform_indices = @transform_0, window_bounds = array<i64: 128, 32>}, {transform_indices = @transform_1, window_bounds = array<i64: 128, 16>}, {pipeline_mode = #tpu.pipeline_mode<synchronous>, transform_indices = @transform_2, window_bounds = array<i64: 64, 32>}, {pipeline_mode = #tpu.pipeline_mode<synchronous>, transform_indices = @transform_3, window_bounds = array<i64: 64, 1>}, {pipeline_mode = #tpu.pipeline_mode<synchronous>, transform_indices = @transform_4, window_bounds = array<i64: 64, 16>}, {pipeline_mode = #tpu.pipeline_mode<synchronous>, transform_indices = @transform_5, window_bounds = array<i64: 64, 1>}, {transform_indices = @transform_6, window_bounds = array<i64: 1, 1>}, {transform_indices = @transform_7, window_bounds = array<i64: 1, 128>}]} {
    %c0 = arith.constant 0 : index
    %c0_0 = arith.constant 0 : index
    %0 = vector.load %arg3[%c0, %c0_0] : memref<64x32xf32, #tpu.memory_space<vmem>>, vector<64x32xf32>
    %c0_1 = arith.constant 0 : index
    %c0_2 = arith.constant 0 : index
    %1 = vector.load %arg1[%c0_1, %c0_2] : memref<128x32xf32, #tpu.memory_space<vmem>>, vector<128x32xf32>
    %cst = arith.constant dense<0.000000e+00> : vector<64x128xf32>
    %2 = tpu.matmul %0, %1, %cst {dimension_numbers = #tpu.dot_dimension_numbers<[1], [1], [0], [0], [0, 0, 1, 0], [], []>} : vector<64x32xf32>, vector<128x32xf32>, vector<64x128xf32> -> vector<64x128xf32>
    %c0_3 = arith.constant 0 : index
    %c0_4 = arith.constant 0 : index
    %3 = vector.load %arg5[%c0_3, %c0_4] : memref<64x16xf32, #tpu.memory_space<vmem>>, vector<64x16xf32>
    %c0_5 = arith.constant 0 : index
    %c0_6 = arith.constant 0 : index
    %4 = vector.load %arg2[%c0_5, %c0_6] : memref<128x16xf32, #tpu.memory_space<vmem>>, vector<128x16xf32>
    %cst_7 = arith.constant dense<0.000000e+00> : vector<64x128xf32>
    %5 = tpu.matmul %3, %4, %cst_7 {dimension_numbers = #tpu.dot_dimension_numbers<[1], [1], [0], [0], [0, 0, 1, 0], [], []>} : vector<64x16xf32>, vector<128x16xf32>, vector<64x128xf32> -> vector<64x128xf32>
    %c0_8 = arith.constant 0 : index
    %c0_9 = arith.constant 0 : index
    %6 = vector.load %arg4[%c0_8, %c0_9] : memref<64x1xf32, #tpu.memory_space<vmem>>, vector<64x1xf32>
    %7 = vector.broadcast %6 : vector<64x1xf32> to vector<64x128xf32>
    %8 = arith.addf %2, %7 : vector<64x128xf32>
    %cst_10 = arith.constant 0.00999999977 : f32
    %9 = vector.broadcast %cst_10 : f32 to vector<64x128xf32>
    %10 = arith.mulf %9, %8 : vector<64x128xf32>
    %11 = arith.maximumf %8, %10 : vector<64x128xf32>
    %c0_11 = arith.constant 0 : index
    %c0_12 = arith.constant 0 : index
    %12 = vector.load %arg6[%c0_11, %c0_12] : memref<64x1xf32, #tpu.memory_space<vmem>>, vector<64x1xf32>
    %13 = vector.broadcast %12 : vector<64x1xf32> to vector<64x128xf32>
    %14 = arith.addf %5, %13 : vector<64x128xf32>
    %cst_13 = arith.constant 0.00999999977 : f32
    %15 = vector.broadcast %cst_13 : f32 to vector<64x128xf32>
    %16 = arith.mulf %15, %14 : vector<64x128xf32>
    %17 = arith.maximumf %14, %16 : vector<64x128xf32>
    %18 = arith.mulf %11, %17 : vector<64x128xf32>
    %cst_14 = arith.constant dense<0.000000e+00> : vector<128xf32>
    %19 = vector.multi_reduction <add>, %18, %cst_14 [0] : vector<64x128xf32> to vector<128xf32>
    %20 = vector.shape_cast %19 : vector<128xf32> to vector<1x128xf32>
    %c0_15 = arith.constant 0 : index
    %c0_16 = arith.constant 0 : index
    %21 = memref.load %arg7[%c0_15, %c0_16] : memref<1x1xf32, #tpu.memory_space<smem>>
    %22 = vector.broadcast %21 : f32 to vector<1x128xf32>
    %23 = arith.addf %20, %22 : vector<1x128xf32>
    %c0_17 = arith.constant 0 : index
    %c0_18 = arith.constant 0 : index
    %24 = vector.load %arg8[%c0_17, %c0_18] : memref<1x128xf32, #tpu.memory_space<vmem>>, vector<1x128xf32>
    tpu.vector_store %arg8[%c0_17, %c0_18], %23 {strides = array<i32>} : memref<1x128xf32, #tpu.memory_space<vmem>>, vector<1x128xf32>,
    return
  }
  func.func @transform_0(%arg0: i32) -> (i32, i32) {
    %c0_i32 = arith.constant 0 : i32
    %c0_i32_0 = arith.constant 0 : i32
    return %arg0, %c0_i32 : i32, i32
  }
  func.func @transform_1(%arg0: i32) -> (i32, i32) {
    %c0_i32 = arith.constant 0 : i32
    %c0_i32_0 = arith.constant 0 : i32
    return %arg0, %c0_i32 : i32, i32
  }
  func.func @transform_2(%arg0: i32) -> (i32, i32) {
    %c0_i32 = arith.constant 0 : i32
    %c0_i32_0 = arith.constant 0 : i32
    %c0_i32_1 = arith.constant 0 : i32
    return %c0_i32, %c0_i32_0 : i32, i32
  }
  func.func @transform_3(%arg0: i32) -> (i32, i32) {
    %c0_i32 = arith.constant 0 : i32
    %c0_i32_0 = arith.constant 0 : i32
    %c0_i32_1 = arith.constant 0 : i32
    return %c0_i32, %c0_i32_0 : i32, i32
  }
  func.func @transform_4(%arg0: i32) -> (i32, i32) {
    %c0_i32 = arith.constant 0 : i32
    %c0_i32_0 = arith.constant 0 : i32
    %c0_i32_1 = arith.constant 0 : i32
    return %c0_i32, %c0_i32_0 : i32, i32
  }
  func.func @transform_5(%arg0: i32) -> (i32, i32) {
    %c0_i32 = arith.constant 0 : i32
    %c0_i32_0 = arith.constant 0 : i32
    %c0_i32_1 = arith.constant 0 : i32
    return %c0_i32, %c0_i32_0 : i32, i32
  }
  func.func @transform_6(%arg0: i32) -> (i32, i32) {
    %c0_i32 = arith.constant 0 : i32
    %c0_i32_0 = arith.constant 0 : i32
    %c0_i32_1 = arith.constant 0 : i32
    return %c0_i32, %c0_i32_0 : i32, i32
  }
  func.func @transform_7(%arg0: i32) -> (i32, i32) {
    %c0_i32 = arith.constant 0 : i32
    %c0_i32_0 = arith.constant 0 : i32
    return %c0_i32, %arg0 : i32, i32
  }
}

</mosaic_0001>

<llo_original>
// kernel: tpu_custom_call.1
$region0: #{tpu_custom_call.1}
  #allocation0 [shape = 'u32[]', space=smem, size = 0x4, offset = 0x4, fixed_abs, tag = 'smem constant byte address 0x4 - core index']
  #allocation1 [shape = 'u32[72,128]{1,0:T(1,128)}', space=vmem, size = 0x9000, scoped, tag = 'internal scratch']
  #allocation2 [shape = 'f32[1,1]{1,0:T(1,128)S(6)}', space=smem, size = 0x200, scoped, tag = 'scoped memory for tpu_custom_call.1']
  %s0 = inlined_call_operand.vmem [shape: f32[8,32], index: 0, kind: input, shape index: {}]
  %s1 = inlined_call_operand.vmem [shape: f32[8,16], index: 1, kind: input, shape index: {}]
  %s2 = inlined_call_operand.vmem [shape: f32[64,32], index: 2, kind: input, shape index: {}]
  %s3 = inlined_call_operand.vmem [shape: f32[64,1], index: 3, kind: input, shape index: {}]
  %s4 = inlined_call_operand.vmem [shape: f32[64,16], index: 4, kind: input, shape index: {}]
  %s5 = inlined_call_operand.vmem [shape: f32[64,1], index: 5, kind: input, shape index: {}]
  %s6 = inlined_call_operand.<no memory space> [shape: f32[1,1], index: 6, kind: input, shape index: {}]
  %s7 = inlined_call_operand.hbm [shape: f32[1,128], index: 7, kind: output, shape index: {}]
  %s8 = sld [smem:[#allocation0]]
  $region38: #{tpu_custom_call.1} parent=0
    _
  %s10 = ssub.s32 1, %s8
  %s11 = scalar_select 0, %s10, %s8
  %12 = sst [smem:[#allocation2]] %s6
  $region1: #{tpu_custom_call.1} parent=0
    #allocation3 [shape = 'u8[512]{0}', space=vmem, size = 0x400, scoped, tag = 'output window, operand 0, single buffered']
    #allocation4 [shape = 's32[1]{0}', space=sflag, size = 0x4, scoped, tag = 'scoped memory for tpu_custom_call.1']
    %13 = vsyncpa [#allocation4], 0
    // Predicated region
    $region2: #{tpu_custom_call.1} parent=1 // pred_check
      _
    $region3: #{tpu_custom_call.1} parent=1 // pred_check_branch
      %15 = sbr.rel (0) target = $region5
    $region4: #{tpu_custom_call.1} parent=1 // pred_region
      _
    $region5: #{tpu_custom_call.1} parent=1 // pred_fallthru
      _
    // Predicated region
    $region6: #{tpu_custom_call.1} parent=1 // pred_check
      _
    $region7: #{tpu_custom_call.1} parent=1 // pred_check_branch
      %17 = sbr.rel (0) target = $region9
    $region8: #{tpu_custom_call.1} parent=1 // pred_region
      _
    $region9: #{tpu_custom_call.1} parent=1 // pred_fallthru
      _
    // Predicated region
    $region10: #{tpu_custom_call.1} parent=1 // pred_check
      _
    $region11: #{tpu_custom_call.1} parent=1 // pred_check_branch
      %19 = sbr.rel (0) target = $region13
    $region12: #{tpu_custom_call.1} parent=1 // pred_region
      _
    $region13: #{tpu_custom_call.1} parent=1 // pred_fallthru
      _
    // Predicated region
    $region14: #{tpu_custom_call.1} parent=1 // pred_check
      _
    $region15: #{tpu_custom_call.1} parent=1 // pred_check_branch
      %21 = sbr.rel (0) target = $region17
    $region16: #{tpu_custom_call.1} parent=1 // pred_region
      _
    $region17: #{tpu_custom_call.1} parent=1 // pred_fallthru
      _
    // Predicated region
    $region18: #{tpu_custom_call.1} parent=1 // pred_check
      _
    $region19: #{tpu_custom_call.1} parent=1 // pred_check_branch
      %23 = sbr.rel (0) target = $region21
    $region20: #{tpu_custom_call.1} parent=1 // pred_region
      _
    $region21: #{tpu_custom_call.1} parent=1 // pred_fallthru
      _
    // Predicated region
    $region22: #{tpu_custom_call.1} parent=1 // pred_check
      _
    $region23: #{tpu_custom_call.1} parent=1 // pred_check_branch
      %25 = sbr.rel (0) target = $region25
    $region24: #{tpu_custom_call.1} parent=1 // pred_region
      _
    $region25: #{tpu_custom_call.1} parent=1 // pred_fallthru
      _
    // Predicated region
    $region26: #{tpu_custom_call.1} parent=1 // pred_check
      _
    $region27: #{tpu_custom_call.1} parent=1 // pred_check_branch
      %27 = sbr.rel (0) target = $region29
    $region28: #{tpu_custom_call.1} parent=1 // pred_region
      _
    $region29: #{tpu_custom_call.1} parent=1 // pred_fallthru
      _
    %v28 = vld [vmem:[%s2] sm:$0xff]
    %v29 = vld [vmem:[%s2 + $0x8] sm:$0xff]
    %v30 = vld [vmem:[%s2 + $0x10] sm:$0xff]
    %v31 = vld [vmem:[%s2 + $0x18] sm:$0xff]
    %v32 = vld [vmem:[%s2 + $0x20] sm:$0xff]
    %v33 = vld [vmem:[%s2 + $0x28] sm:$0xff]
    %v34 = vld [vmem:[%s2 + $0x30] sm:$0xff]
    %v35 = vld [vmem:[%s2 + $0x38] sm:$0xff]
    %v36 = vld [vmem:[%s0] sm:$0xff]
    %v37 = vld [vmem:[%s0 + $0x8] sm:$0xff]
    %v38 = vld [vmem:[%s0 + $0x10] sm:$0xff]
    %v39 = vld [vmem:[%s0 + $0x18] sm:$0xff]
    %v40 = vld [vmem:[%s0 + $0x20] sm:$0xff]
    %v41 = vld [vmem:[%s0 + $0x28] sm:$0xff]
    %v42 = vld [vmem:[%s0 + $0x30] sm:$0xff]
    %v43 = vld [vmem:[%s0 + $0x38] sm:$0xff]
    %v44 = vld [vmem:[%s0 + $0x40] sm:$0xff]
    %v45 = vld [vmem:[%s0 + $0x48] sm:$0xff]
    %v46 = vld [vmem:[%s0 + $0x50] sm:$0xff]
    %v47 = vld [vmem:[%s0 + $0x58] sm:$0xff]
    %v48 = vld [vmem:[%s0 + $0x60] sm:$0xff]
    %v49 = vld [vmem:[%s0 + $0x68] sm:$0xff]
    %v50 = vld [vmem:[%s0 + $0x70] sm:$0xff]
    %v51 = vld [vmem:[%s0 + $0x78] sm:$0xff]
    %v52 = vld [vmem:[%s4] sm:$0xff]
    %v53 = vld [vmem:[%s4 + $0x8] sm:$0xff]
    %v54 = vld [vmem:[%s4 + $0x10] sm:$0xff]
    %v55 = vld [vmem:[%s4 + $0x18] sm:$0xff]
    %v56 = vld [vmem:[%s4 + $0x20] sm:$0xff]
    %v57 = vld [vmem:[%s4 + $0x28] sm:$0xff]
    %v58 = vld [vmem:[%s4 + $0x30] sm:$0xff]
    %v59 = vld [vmem:[%s4 + $0x38] sm:$0xff]
    %v60 = vld [vmem:[%s1] sm:$0xff]
    %v61 = vld [vmem:[%s1 + $0x8] sm:$0xff]
    %v62 = vld [vmem:[%s1 + $0x10] sm:$0xff]
    %v63 = vld [vmem:[%s1 + $0x18] sm:$0xff]
    %v64 = vld [vmem:[%s1 + $0x20] sm:$0xff]
    %v65 = vld [vmem:[%s1 + $0x28] sm:$0xff]
    %v66 = vld [vmem:[%s1 + $0x30] sm:$0xff]
    %v67 = vld [vmem:[%s1 + $0x38] sm:$0xff]
    %v68 = vld [vmem:[%s1 + $0x40] sm:$0xff]
    %v69 = vld [vmem:[%s1 + $0x48] sm:$0xff]
    %v70 = vld [vmem:[%s1 + $0x50] sm:$0xff]
    %v71 = vld [vmem:[%s1 + $0x58] sm:$0xff]
    %v72 = vld [vmem:[%s1 + $0x60] sm:$0xff]
    %v73 = vld [vmem:[%s1 + $0x68] sm:$0xff]
    %v74 = vld [vmem:[%s1 + $0x70] sm:$0xff]
    %v75 = vld [vmem:[%s1 + $0x78] sm:$0xff]
    %v76 = vld [vmem:[%s3] sm:$0xff]
    %v77 = vld [vmem:[%s3 + $0x8] sm:$0xff]
    %v78 = vld [vmem:[%s3 + $0x10] sm:$0xff]
    %v79 = vld [vmem:[%s3 + $0x18] sm:$0xff]
    %v80 = vld [vmem:[%s3 + $0x20] sm:$0xff]
    %v81 = vld [vmem:[%s3 + $0x28] sm:$0xff]
    %v82 = vld [vmem:[%s3 + $0x30] sm:$0xff]
    %v83 = vld [vmem:[%s3 + $0x38] sm:$0xff]
    %85 = vset.pattern.permute.xlu0 0
    %86 = vperm.xlu0 %85, %v76
    %v87 = vpop.permute.xlu0 %86
    %90 = vset.pattern.permute.xlu0 0
    %91 = vperm.xlu0 %90, %v77
    %v92 = vpop.permute.xlu0 %91
    %95 = vset.pattern.permute.xlu0 0
    %96 = vperm.xlu0 %95, %v78
    %v97 = vpop.permute.xlu0 %96
    %100 = vset.pattern.permute.xlu0 0
    %101 = vperm.xlu0 %100, %v79
    %v102 = vpop.permute.xlu0 %101
    %105 = vset.pattern.permute.xlu0 0
    %106 = vperm.xlu0 %105, %v80
    %v107 = vpop.permute.xlu0 %106
    %110 = vset.pattern.permute.xlu0 0
    %111 = vperm.xlu0 %110, %v81
    %v112 = vpop.permute.xlu0 %111
    %115 = vset.pattern.permute.xlu0 0
    %116 = vperm.xlu0 %115, %v82
    %v117 = vpop.permute.xlu0 %116
    %120 = vset.pattern.permute.xlu0 0
    %121 = vperm.xlu0 %120, %v83
    %v122 = vpop.permute.xlu0 %121
    %vm124 = vcmask 261120
    %v126 = vsel %vm124, %v28, 0
    %v129 = vsel %vm124, %v29, 0
    %v132 = vsel %vm124, %v30, 0
    %v135 = vsel %vm124, %v31, 0
    %v138 = vsel %vm124, %v32, 0
    %v141 = vsel %vm124, %v33, 0
    %v144 = vsel %vm124, %v34, 0
    %v147 = vsel %vm124, %v35, 0
    %v150 = vsel %vm124, %v36, 0
    %v153 = vsel %vm124, %v37, 0
    %v156 = vsel %vm124, %v38, 0
    %v159 = vsel %vm124, %v39, 0
    %v162 = vsel %vm124, %v40, 0
    %v165 = vsel %vm124, %v41, 0
    %v168 = vsel %vm124, %v42, 0
    %v171 = vsel %vm124, %v43, 0
    %v174 = vsel %vm124, %v44, 0
    %v177 = vsel %vm124, %v45, 0
    %v180 = vsel %vm124, %v46, 0
    %v183 = vsel %vm124, %v47, 0
    %v186 = vsel %vm124, %v48, 0
    %v189 = vsel %vm124, %v49, 0
    %v192 = vsel %vm124, %v50, 0
    %v195 = vsel %vm124, %v51, 0
    %197 = vmatpush.xpose.msra.mxu0 %v195
    %198 = vmatpush.xpose.msra.mxu0 %v192
    %199 = vmatpush.xpose.msra.mxu0 %v189
    %200 = vmatpush.xpose.msra.mxu0 %v186
    %201 = vmatpush.xpose.msra.mxu0 %v183
    %202 = vmatpush.xpose.msra.mxu0 %v180
    %203 = vmatpush.xpose.msra.mxu0 %v177
    %204 = vmatpush.xpose.msra.mxu0 %v174
    %205 = vmatpush.xpose.msra.mxu0 %v171
    %206 = vmatpush.xpose.msra.mxu0 %v168
    %207 = vmatpush.xpose.msra.mxu0 %v165
    %208 = vmatpush.xpose.msra.mxu0 %v162
    %209 = vmatpush.xpose.msra.mxu0 %v159
    %210 = vmatpush.xpose.msra.mxu0 %v156
    %211 = vmatpush.xpose.msra.mxu0 %v153
    %212 = vmatpush.xpose.msra.mxu0 %v150
    %213 = vmatmul.f32.gmra.mxu0 %v126
    %v214 = vpop.f32.mrf.mxu0
    %v215 = vadd.f32 %v87, %v214
    %216 = vmatmul.f32.gmra.mxu0 %v129
    %v217 = vpop.f32.mrf.mxu0
    %v218 = vadd.f32 %v92, %v217
    %219 = vmatmul.f32.gmra.mxu0 %v132
    %v220 = vpop.f32.mrf.mxu0
    %v221 = vadd.f32 %v97, %v220
    %222 = vmatmul.f32.gmra.mxu0 %v135
    %v223 = vpop.f32.mrf.mxu0
    %v224 = vadd.f32 %v102, %v223
    %225 = vmatmul.f32.gmra.mxu0 %v138
    %v226 = vpop.f32.mrf.mxu0
    %v227 = vadd.f32 %v107, %v226
    %228 = vmatmul.f32.gmra.mxu0 %v141
    %v229 = vpop.f32.mrf.mxu0
    %v230 = vadd.f32 %v112, %v229
    %231 = vmatmul.f32.gmra.mxu0 %v144
    %v232 = vpop.f32.mrf.mxu0
    %v233 = vadd.f32 %v117, %v232
    %234 = vmatmul.f32.gmra.mxu0 %v147
    %v235 = vpop.f32.mrf.mxu0
    %v236 = vadd.f32 %v122, %v235
    %237 = vdwg.mxu0
    %v238 = vmul.f32 %v215, 0.01
    %v239 = vmul.f32 %v218, 0.01
    %v240 = vmul.f32 %v221, 0.01
    %v241 = vmul.f32 %v224, 0.01
    %v242 = vmul.f32 %v227, 0.01
    %v243 = vmul.f32 %v230, 0.01
    %v244 = vmul.f32 %v233, 0.01
    %v245 = vmul.f32 %v236, 0.01
    %v246 = vmax.f32 %v215, %v238
    %v247 = vmax.f32 %v218, %v239
    %v248 = vmax.f32 %v221, %v240
    %v249 = vmax.f32 %v224, %v241
    %v250 = vmax.f32 %v227, %v242
    %v251 = vmax.f32 %v230, %v243
    %v252 = vmax.f32 %v233, %v244
    %v253 = vmax.f32 %v236, %v245
    %v254 = vld [vmem:[%s5] sm:$0xff]
    %v255 = vld [vmem:[%s5 + $0x8] sm:$0xff]
    %v256 = vld [vmem:[%s5 + $0x10] sm:$0xff]
    %v257 = vld [vmem:[%s5 + $0x18] sm:$0xff]
    %v258 = vld [vmem:[%s5 + $0x20] sm:$0xff]
    %v259 = vld [vmem:[%s5 + $0x28] sm:$0xff]
    %v260 = vld [vmem:[%s5 + $0x30] sm:$0xff]
    %v261 = vld [vmem:[%s5 + $0x38] sm:$0xff]
    %263 = vset.pattern.permute.xlu0 0
    %264 = vperm.xlu0 %263, %v254
    %v265 = vpop.permute.xlu0 %264
    %268 = vset.pattern.permute.xlu0 0
    %269 = vperm.xlu0 %268, %v255
    %v270 = vpop.permute.xlu0 %269
    %273 = vset.pattern.permute.xlu0 0
    %274 = vperm.xlu0 %273, %v256
    %v275 = vpop.permute.xlu0 %274
    %278 = vset.pattern.permute.xlu0 0
    %279 = vperm.xlu0 %278, %v257
    %v280 = vpop.permute.xlu0 %279
    %283 = vset.pattern.permute.xlu0 0
    %284 = vperm.xlu0 %283, %v258
    %v285 = vpop.permute.xlu0 %284
    %288 = vset.pattern.permute.xlu0 0
    %289 = vperm.xlu0 %288, %v259
    %v290 = vpop.permute.xlu0 %289
    %293 = vset.pattern.permute.xlu0 0
    %294 = vperm.xlu0 %293, %v260
    %v295 = vpop.permute.xlu0 %294
    %298 = vset.pattern.permute.xlu0 0
    %299 = vperm.xlu0 %298, %v261
    %v300 = vpop.permute.xlu0 %299
    %vm302 = vcmask 130048
    %v304 = vsel %vm302, %v52, 0
    %v307 = vsel %vm302, %v53, 0
    %v310 = vsel %vm302, %v54, 0
    %v313 = vsel %vm302, %v55, 0
    %v316 = vsel %vm302, %v56, 0
    %v319 = vsel %vm302, %v57, 0
    %v322 = vsel %vm302, %v58, 0
    %v325 = vsel %vm302, %v59, 0
    %v328 = vsel %vm302, %v60, 0
    %v331 = vsel %vm302, %v61, 0
    %v334 = vsel %vm302, %v62, 0
    %v337 = vsel %vm302, %v63, 0
    %v340 = vsel %vm302, %v64, 0
    %v343 = vsel %vm302, %v65, 0
    %v346 = vsel %vm302, %v66, 0
    %v349 = vsel %vm302, %v67, 0
    %v352 = vsel %vm302, %v68, 0
    %v355 = vsel %vm302, %v69, 0
    %v358 = vsel %vm302, %v70, 0
    %v361 = vsel %vm302, %v71, 0
    %v364 = vsel %vm302, %v72, 0
    %v367 = vsel %vm302, %v73, 0
    %v370 = vsel %vm302, %v74, 0
    %v373 = vsel %vm302, %v75, 0
    %375 = vmatpush.xpose.msra.mxu0 %v373
    %376 = vmatpush.xpose.msra.mxu0 %v370
    %377 = vmatpush.xpose.msra.mxu0 %v367
    %378 = vmatpush.xpose.msra.mxu0 %v364
    %379 = vmatpush.xpose.msra.mxu0 %v361
    %380 = vmatpush.xpose.msra.mxu0 %v358
    %381 = vmatpush.xpose.msra.mxu0 %v355
    %382 = vmatpush.xpose.msra.mxu0 %v352
    %383 = vmatpush.xpose.msra.mxu0 %v349
    %384 = vmatpush.xpose.msra.mxu0 %v346
    %385 = vmatpush.xpose.msra.mxu0 %v343
    %386 = vmatpush.xpose.msra.mxu0 %v340
    %387 = vmatpush.xpose.msra.mxu0 %v337
    %388 = vmatpush.xpose.msra.mxu0 %v334
    %389 = vmatpush.xpose.msra.mxu0 %v331
    %390 = vmatpush.xpose.msra.mxu0 %v328
    %391 = vmatmul.f32.gmra.mxu0 %v304
    %v392 = vpop.f32.mrf.mxu0
    %v393 = vadd.f32 %v265, %v392
    %394 = vmatmul.f32.gmra.mxu0 %v307
    %v395 = vpop.f32.mrf.mxu0
    %v396 = vadd.f32 %v270, %v395
    %397 = vmatmul.f32.gmra.mxu0 %v310
    %v398 = vpop.f32.mrf.mxu0
    %v399 = vadd.f32 %v275, %v398
    %400 = vmatmul.f32.gmra.mxu0 %v313
    %v401 = vpop.f32.mrf.mxu0
    %v402 = vadd.f32 %v280, %v401
    %403 = vmatmul.f32.gmra.mxu0 %v316
    %v404 = vpop.f32.mrf.mxu0
    %v405 = vadd.f32 %v285, %v404
    %406 = vmatmul.f32.gmra.mxu0 %v319
    %v407 = vpop.f32.mrf.mxu0
    %v408 = vadd.f32 %v290, %v407
    %409 = vmatmul.f32.gmra.mxu0 %v322
    %v410 = vpop.f32.mrf.mxu0
    %v411 = vadd.f32 %v295, %v410
    %412 = vmatmul.f32.gmra.mxu0 %v325
    %v413 = vpop.f32.mrf.mxu0
    %v414 = vadd.f32 %v300, %v413
    %415 = vdwg.mxu0
    %v416 = vmul.f32 %v393, 0.01
    %v417 = vmul.f32 %v396, 0.01
    %v418 = vmul.f32 %v399, 0.01
    %v419 = vmul.f32 %v402, 0.01
    %v420 = vmul.f32 %v405, 0.01
    %v421 = vmul.f32 %v408, 0.01
    %v422 = vmul.f32 %v411, 0.01
    %v423 = vmul.f32 %v414, 0.01
    %v424 = vmax.f32 %v393, %v416
    %v425 = vmax.f32 %v396, %v417
    %v426 = vmax.f32 %v399, %v418
    %v427 = vmax.f32 %v402, %v419
    %v428 = vmax.f32 %v405, %v420
    %v429 = vmax.f32 %v408, %v421
    %v430 = vmax.f32 %v411, %v422
    %v431 = vmax.f32 %v414, %v423
    %v432 = vmul.f32 %v246, %v424
    %v433 = vmul.f32 %v247, %v425
    %v434 = vmul.f32 %v248, %v426
    %v435 = vmul.f32 %v249, %v427
    %v436 = vmul.f32 %v250, %v428
    %v437 = vmul.f32 %v251, %v429
    %v438 = vmul.f32 %v252, %v430
    %v439 = vmul.f32 %v253, %v431
    %v440 = vadd.f32 %v432, %v433
    %v441 = vadd.f32 %v440, %v434
    %v442 = vadd.f32 %v441, %v435
    %v443 = vadd.f32 %v442, %v436
    %v444 = vadd.f32 %v443, %v437
    %v445 = vadd.f32 %v444, %v438
    %v446 = vadd.f32 %v445, %v439
    %v447 = vrot.slane %v446, 4
    %v448 = vadd.f32 %v446, %v447
    %v449 = vrot.slane %v448, 2
    %v450 = vadd.f32 %v448, %v449
    %v451 = vrot.slane %v450, 1
    %v452 = vadd.f32 %v450, %v451
    %s453 = sld [smem:[#allocation2]]
    %v454 = vstv %s453
    %v455 = vadd.f32 %v452, %v454
    %456 = vst [vmem:[#allocation3] sm:$0x1] %v455
    // Predicated region
    $region30: #{tpu_custom_call.1} parent=1 // pred_check
      _
    $region31: #{tpu_custom_call.1} parent=1 // pred_check_branch
      %458 = sbr.rel (0) target = $region33
    $region32: #{tpu_custom_call.1} parent=1 // pred_region
      %460 = vsyncadd [#allocation4], 0
      %s462 = sshll.u32 [#allocation3], 4
      %s463 = int_to_ptr.vmem [resolvable:$true] %s462
      %s464 = sshll.u32 %s7, 4
      %s465 = int_to_ptr.hbm [resolvable:$true] %s464
      %467 = dma.vmem_to_hbm [thread:$0]  %s463, 16, %s465, [#allocation4]
    $region33: #{tpu_custom_call.1} parent=1 // pred_fallthru
      _
    // Predicated region
    $region34: #{tpu_custom_call.1} parent=1 // pred_check
      _
    $region35: #{tpu_custom_call.1} parent=1 // pred_check_branch
      %469 = sbr.rel (0) target = $region37
    $region36: #{tpu_custom_call.1} parent=1 // pred_region
      %471 = dma.done [#allocation4], 16
    $region37: #{tpu_custom_call.1} parent=1 // pred_fallthru
      _
    %472 = vsyncpa [#allocation4], 1

</llo_original>
